<compile_context>
chip_gen: v7x
topology: tpu7x:2x2x1
jax: 0.10.0
libtpu: 0.0.40
codegen_flags: <defaults>
</compile_context>

<pallas_src>
import functools

import jax
import jax.numpy as jnp
from jax import lax
from jax.experimental import pallas as pl
from jax.experimental.pallas import tpu as pltpu

MARGIN = 1.0  # CFG.margin — deterministic synthetic value

_LANE = 128
_SUBLANE = 8


def _vmem_capacity_bytes():
    """Physical VMEM per core; conservative (v7x) fallback if query fails."""
    try:
        info = pltpu.get_tpu_info()
        cap = getattr(info, "vmem_capacity_bytes", None)
        if cap:
            return int(cap)
    except Exception:
        pass
    return 64 * 1024 * 1024


def _triplet_colbert_kernel(q_ref, p_ref, n_ref, out_ref, *, margin, bblk, true_b):
    # q_ref: (BBLK, Lq, D) bf16; p_ref: (BBLK, Lp, D); n_ref: (BBLK, Ln, D)
    # out_ref: (1, 8, 128) f32 — per-block partial sum broadcast over the tile.
    q = q_ref[...]
    p = p_ref[...]
    n = n_ref[...]

    # TODO(synk): for very long documents (large Lp/Ln), stream the doc axis
    # with a second "arbitrary" grid dimension and running maxes in VMEM
    # scratch instead of materializing the full (BBLK, Lq, K) f32 sims.
    sim_p = jnp.einsum("bqd,bkd->bqk", q, p, preferred_element_type=jnp.float32)
    sim_n = jnp.einsum("bqd,bkd->bqk", q, n, preferred_element_type=jnp.float32)

    max_p = jnp.max(sim_p, axis=-1)                                # (BBLK, Lq)
    max_n = jnp.max(sim_n, axis=-1)                                # (BBLK, Lq)

    # score_n - score_p per batch (sum over query tokens).
    score_diff = jnp.sum(max_n - max_p, axis=-1, keepdims=True)    # (BBLK, 1)

    # Per-batch hinge (all f32 elementwise).
    loss_col = jnp.maximum(jnp.float32(margin) + score_diff, 0.0)  # (BBLK, 1)

    # Zero invalid batches of the ragged tail block (global batch id >= true_b).
    b_idx = lax.broadcasted_iota(jnp.int32, loss_col.shape, 0)
    valid = (pl.program_id(0) * bblk + b_idx) < true_b
    loss_col = jnp.where(valid, loss_col, jnp.float32(0.0))

    # One partial sum per block, written as one aligned (8, 128) tile.
    block_sum = jnp.sum(loss_col, keepdims=True)                   # (1, 1)
    out_ref[...] = jnp.broadcast_to(block_sum[None], out_ref.shape)


def triplet_colbert_loss(q, p, n, margin=MARGIN, block_b=None,
                         compute_dtype=jnp.bfloat16):
    """q: (B, Lq, D); p: (B, Lp, D); n: (B, Ln, D) -> scalar loss."""
    B, Lq, D = q.shape
    _, Lp, _ = p.shape
    _, Ln, _ = n.shape

    # bf16 inputs halve HBM traffic on a bandwidth-bound kernel; accumulation
    # inside the kernel stays f32.  (For clean bf16 packing keep Lq, Lp, Ln
    # multiples of 16 and D a multiple of 128.)
    q = q.astype(compute_dtype)
    p = p.astype(compute_dtype)
    n = n.astype(compute_dtype)

    vmem_cap = _vmem_capacity_bytes()
    vmem_limit = min(vmem_cap // 2, 96 * 1024 * 1024)  # 32 MiB v7x, 64 MiB v5e/v6e
    block_budget = vmem_limit // 3                      # headroom for compiler temps

    if block_b is None:
        itemsize = jnp.dtype(compute_dtype).itemsize
        per_batch = (
            2 * (Lq + Lp + Ln) * D * itemsize   # double-buffered input tiles
            + Lq * (Lp + Ln) * 4                # f32 sim_p + sim_n intermediates
            + 4 * Lq * 4                        # small per-batch f32 temporaries
        )
        block_b = max(1, min(B, block_budget // per_batch))
    if B >= 2:
        # At least 2 parallel grid blocks so both v7x TensorCores get work.
        block_b = min(block_b, pl.cdiv(B, 2))
    bblk = int(max(1, block_b))

    num_blocks = pl.cdiv(B, bblk)

    out = pl.pallas_call(
        functools.partial(_triplet_colbert_kernel,
                          margin=float(margin), bblk=bblk, true_b=B),
        out_shape=jax.ShapeDtypeStruct((num_blocks, _SUBLANE, _LANE), jnp.float32),
        grid=(num_blocks,),
        in_specs=[
            pl.BlockSpec((bblk, Lq, D), lambda i: (i, 0, 0)),
            pl.BlockSpec((bblk, Lp, D), lambda i: (i, 0, 0)),
            pl.BlockSpec((bblk, Ln, D), lambda i: (i, 0, 0)),
        ],
        out_specs=pl.BlockSpec((1, _SUBLANE, _LANE), lambda i: (i, 0, 0)),
        compiler_params=pltpu.CompilerParams(
            dimension_semantics=("parallel",),
            vmem_limit_bytes=int(vmem_limit),
        ),
    )(q, p, n)

    # Tiny glue: sum the per-block partial sums and divide by the true batch.
    return jnp.sum(out[:, 0, 0]) / jnp.float32(B)


def _reference_loss(q, p, n, margin=MARGIN):
    def colbert_score(a, d):
        sim = jnp.einsum("bqd,bkd->bqk", a, d, precision=lax.Precision.HIGHEST)
        return jnp.sum(jnp.max(sim, axis=-1), axis=-1)

    return jnp.mean(
        jnp.maximum(margin + colbert_score(q, n) - colbert_score(q, p), 0.0)
    )


if __name__ == "__main__":
    key = jax.random.PRNGKey(0)
    kq, kp, kn = jax.random.split(key, 3)

    # Small, layout-friendly shapes (D=128 fills the lane / MXU K dim; bf16
    # packing likes token counts that are multiples of 16).  B=7 exercises
    # the in-kernel ragged-tail masking (no jnp.pad path anymore).
    B, Lq, Lp, Ln, D = 7, 16, 32, 32, 128

    def _unit(x):
        return x / jnp.linalg.norm(x, axis=-1, keepdims=True)

    q = _unit(jax.random.normal(kq, (B, Lq, D), dtype=jnp.float32))
    p = _unit(jax.random.normal(kp, (B, Lp, D), dtype=jnp.float32))
    n = _unit(jax.random.normal(kn, (B, Ln, D), dtype=jnp.float32))

    loss = jax.block_until_ready(triplet_colbert_loss(q, p, n))
    ref = jax.block_until_ready(_reference_loss(q, p, n))

    # bf16 inputs vs. f32 HIGHEST-precision reference: expect ~1e-3 abs error.
    assert jnp.allclose(loss, ref, atol=2e-2, rtol=2e-2), (loss, ref)
    print("KERNEL_OK")
</pallas_src>

<mosaic_0001>
module attributes {stable_mosaic.version = 11 : i64} {
  func.func @_triplet_colbert_kernel(%arg0: i32, %arg1: memref<4x16x128xbf16, #tpu.memory_space<vmem>>, %arg2: memref<4x32x128xbf16, #tpu.memory_space<vmem>>, %arg3: memref<4x32x128xbf16, #tpu.memory_space<vmem>>, %arg4: memref<1x8x128xf32, #tpu.memory_space<vmem>>) attributes {dimension_semantics = [#tpu.dimension_semantics<parallel>], iteration_bounds = array<i64: 2>, scalar_prefetch = 0 : i64, scratch_operands = 0 : i64, tpu.core_type = #tpu.core_type<tc>, window_params = [{transform_indices = @transform_0, window_bounds = array<i64: 4, 16, 128>}, {transform_indices = @transform_1, window_bounds = array<i64: 4, 32, 128>}, {transform_indices = @transform_2, window_bounds = array<i64: 4, 32, 128>}, {transform_indices = @transform_3, window_bounds = array<i64: 1, 8, 128>}]} {
    %c0 = arith.constant 0 : index
    %c0_0 = arith.constant 0 : index
    %c0_1 = arith.constant 0 : index
    %0 = vector.load %arg1[%c0, %c0_0, %c0_1] : memref<4x16x128xbf16, #tpu.memory_space<vmem>>, vector<4x16x128xbf16>
    %c0_2 = arith.constant 0 : index
    %c0_3 = arith.constant 0 : index
    %c0_4 = arith.constant 0 : index
    %1 = vector.load %arg2[%c0_2, %c0_3, %c0_4] : memref<4x32x128xbf16, #tpu.memory_space<vmem>>, vector<4x32x128xbf16>
    %c0_5 = arith.constant 0 : index
    %c0_6 = arith.constant 0 : index
    %c0_7 = arith.constant 0 : index
    %2 = vector.load %arg3[%c0_5, %c0_6, %c0_7] : memref<4x32x128xbf16, #tpu.memory_space<vmem>>, vector<4x32x128xbf16>
    "tpu.trace_start"() <{level = 10 : i32, message = "bqd,bkd->bqk"}> : () -> ()
    %cst = arith.constant dense<0.000000e+00> : vector<4x16x32xf32>
    %3 = tpu.matmul %0, %1, %cst {dimension_numbers = #tpu.dot_dimension_numbers<[2], [2], [1], [1], [0, 0, 0, 1, 1, 1], [0], [0]>} : vector<4x16x128xbf16>, vector<4x32x128xbf16>, vector<4x16x32xf32> -> vector<4x16x32xf32>
    %cst_8 = arith.constant dense<0.000000e+00> : vector<4x16x32xf32>
    %4 = tpu.matmul %0, %2, %cst_8 {dimension_numbers = #tpu.dot_dimension_numbers<[2], [2], [1], [1], [0, 0, 0, 1, 1, 1], [0], [0]>} : vector<4x16x128xbf16>, vector<4x32x128xbf16>, vector<4x16x32xf32> -> vector<4x16x32xf32>
    "tpu.trace_stop"() : () -> ()
    %cst_9 = arith.constant dense<0xFF800000> : vector<4x16xf32>
    %5 = vector.multi_reduction <maximumf>, %3, %cst_9 [2] : vector<4x16x32xf32> to vector<4x16xf32>
    %cst_10 = arith.constant dense<0xFF800000> : vector<4x16xf32>
    %6 = vector.multi_reduction <maximumf>, %4, %cst_10 [2] : vector<4x16x32xf32> to vector<4x16xf32>
    %7 = arith.subf %6, %5 : vector<4x16xf32>
    %cst_11 = arith.constant dense<0.000000e+00> : vector<4xf32>
    %8 = vector.multi_reduction <add>, %7, %cst_11 [1] : vector<4x16xf32> to vector<4xf32>
    %9 = vector.shape_cast %8 : vector<4xf32> to vector<4x1xf32>
    %cst_12 = arith.constant 1.000000e+00 : f32
    %10 = vector.broadcast %cst_12 : f32 to vector<4x1xf32>
    %11 = arith.addf %10, %9 : vector<4x1xf32>
    %cst_13 = arith.constant 0.000000e+00 : f32
    %12 = vector.broadcast %cst_13 : f32 to vector<4x1xf32>
    %13 = arith.maximumf %11, %12 : vector<4x1xf32>
    %14 = tpu.iota {dimensions = array<i32: 0>} : vector<4x1xi32>
    %c4_i32 = arith.constant 4 : i32
    %15 = arith.muli %arg0, %c4_i32 : i32
    %16 = vector.broadcast %15 : i32 to vector<4x1xi32>
    %17 = arith.addi %16, %14 : vector<4x1xi32>
    %c7_i32 = arith.constant 7 : i32
    %18 = vector.broadcast %c7_i32 : i32 to vector<4x1xi32>
    %19 = arith.cmpi slt, %17, %18 : vector<4x1xi32>
    %cst_14 = arith.constant 0.000000e+00 : f32
    %20 = vector.broadcast %cst_14 : f32 to vector<4x1xf32>
    %21 = arith.select %19, %13, %20 : vector<4x1xi1>, vector<4x1xf32>
    %22 = vector.shape_cast %21 : vector<4x1xf32> to vector<1x4x1xf32>
    %cst_15 = arith.constant dense<0.000000e+00> : vector<1xf32>
    %23 = vector.multi_reduction <add>, %22, %cst_15 [1, 2] : vector<1x4x1xf32> to vector<1xf32>
    %24 = vector.shape_cast %23 : vector<1xf32> to vector<1x1x1xf32>
    %25 = vector.extract %24[0, 0, 0] : f32 from vector<1x1x1xf32>
    %26 = vector.broadcast %25 : f32 to vector<1x1xf32>
    %27 = vector.shape_cast %26 : vector<1x1xf32> to vector<1x1x1xf32>
    %28 = vector.shape_cast %27 : vector<1x1x1xf32> to vector<1x1x1xf32>
    %29 = vector.broadcast %28 : vector<1x1x1xf32> to vector<1x8x128xf32>
    %c0_16 = arith.constant 0 : index
    %c0_17 = arith.constant 0 : index
    %c0_18 = arith.constant 0 : index
    %30 = vector.load %arg4[%c0_16, %c0_17, %c0_18] : memref<1x8x128xf32, #tpu.memory_space<vmem>>, vector<1x8x128xf32>
    tpu.vector_store %arg4[%c0_16, %c0_17, %c0_18], %29 {strides = array<i32>} : memref<1x8x128xf32, #tpu.memory_space<vmem>>, vector<1x8x128xf32>,
    return
  }
  func.func @transform_0(%arg0: i32) -> (i32, i32, i32) {
    %c0_i32 = arith.constant 0 : i32
    %c0_i32_0 = arith.constant 0 : i32
    %c0_i32_1 = arith.constant 0 : i32
    return %arg0, %c0_i32, %c0_i32_0 : i32, i32, i32
  }
  func.func @transform_1(%arg0: i32) -> (i32, i32, i32) {
    %c0_i32 = arith.constant 0 : i32
    %c0_i32_0 = arith.constant 0 : i32
    %c0_i32_1 = arith.constant 0 : i32
    return %arg0, %c0_i32, %c0_i32_0 : i32, i32, i32
  }
  func.func @transform_2(%arg0: i32) -> (i32, i32, i32) {
    %c0_i32 = arith.constant 0 : i32
    %c0_i32_0 = arith.constant 0 : i32
    %c0_i32_1 = arith.constant 0 : i32
    return %arg0, %c0_i32, %c0_i32_0 : i32, i32, i32
  }
  func.func @transform_3(%arg0: i32) -> (i32, i32, i32) {
    %c0_i32 = arith.constant 0 : i32
    %c0_i32_0 = arith.constant 0 : i32
    %c0_i32_1 = arith.constant 0 : i32
    return %arg0, %c0_i32, %c0_i32_0 : i32, i32, i32
  }
}

</mosaic_0001>

<llo_original>
// kernel: tpu_custom_call.1
$region0: #{tpu_custom_call.1}
  #allocation0 [shape = 'u32[]', space=smem, size = 0x4, offset = 0x4, fixed_abs, tag = 'smem constant byte address 0x4 - core index']
  #allocation1 [shape = 'u32[144,128]{1,0:T(1,128)}', space=vmem, size = 0x12000, scoped, tag = 'internal scratch']
  %s0 = inlined_call_operand.hbm [shape: bf16[7,16,128], index: 0, kind: input, shape index: {}]
  %s1 = inlined_call_operand.hbm [shape: bf16[7,32,128], index: 1, kind: input, shape index: {}]
  %s2 = inlined_call_operand.hbm [shape: bf16[7,32,128], index: 2, kind: input, shape index: {}]
  %s3 = inlined_call_operand.hbm [shape: f32[2,8,128], index: 3, kind: output, shape index: {}]
  %s4 = sld [smem:[#allocation0]]
  $region57: #{tpu_custom_call.1} parent=0
    _
  %s6 = ssub.s32 1, %s4
  %s7 = scalar_select 0, %s6, %s4
  $region1: #{tpu_custom_call.1} parent=0
    #allocation2 [shape = 'u8[32768]{0}', space=vmem, size = 0x8000, scoped, tag = 'input window, operand 0']
    #allocation3 [shape = 's32[2]{0}', space=sflag, size = 0x8, scoped, tag = 'scoped memory for tpu_custom_call.1']
    #allocation4 [shape = 's32[2]{0}', space=sflag, size = 0x8, scoped, tag = 'scoped memory for tpu_custom_call.1']
    #allocation5 [shape = 'u8[65536]{0}', space=vmem, size = 0x10000, scoped, tag = 'input window, operand 1']
    #allocation6 [shape = 's32[2]{0}', space=sflag, size = 0x8, scoped, tag = 'scoped memory for tpu_custom_call.1']
    #allocation7 [shape = 'u8[65536]{0}', space=vmem, size = 0x10000, scoped, tag = 'input window, operand 2']
    #allocation8 [shape = 'u8[8192]{0}', space=vmem, size = 0x2000, scoped, tag = 'output window, operand 0']
    %8 = vsyncpa [#allocation3], 0
    %s9 = scalar_lea.sflag [#allocation3], 1
    %10 = vsyncpa %s9, 0
    %11 = vsyncpa [#allocation6], 0
    %s12 = scalar_lea.sflag [#allocation6], 1
    %13 = vsyncpa %s12, 0
    %14 = vsyncpa [#allocation4], 0
    %s15 = scalar_lea.sflag [#allocation4], 1
    %16 = vsyncpa %s15, 0
    loop: start=0, step=1, limit=4
    $region2: #{tpu_custom_call.1} parent=1 // loop_pre_header
      _
    $region3: #{tpu_custom_call.1} parent=1 // loop_header
      %s18 = sphi 0, %s22
      %p19 = scmp.ge.s32.totalorder %s18, 4
      %s28 = sphi 0, %s30
      %s31 = sphi 0, %s28
      %s32 = sphi 0, %s31
      %s48 = sphi 0, %s32
      %s54 = sphi 0, %s56
      %s57 = sphi 0, %s54
      %s58 = sphi 0, %s57
      %s74 = sphi 0, %s58
      %s80 = sphi 0, %s82
      %s83 = sphi 0, %s80
      %s84 = sphi 0, %s83
      %s100 = sphi 0, %s84
      %s106 = sphi 0, %s108
      %s109 = sphi 0, %s106
      %s110 = sphi 0, %s109
      %s126 = sphi 0, %s110
    $region4: #{tpu_custom_call.1} parent=1 // loop_header_branch
      %21 = sbr.rel (%p19) target = $region8
    $region5: #{tpu_custom_call.1} parent=1 // loop_body
      %s23 = ssub.s32 %s18, 1
      %s24 = ssub.s32 %s18, 2
      %s25 = sadd.s32 %s18, 1
      %s26 = ssub.s32 %s18, %s25
      %p27 = scmp.eq.s32.totalorder %s26, 0
      %s29 = sadd.s32 %s28, 1
      %s30 = scalar_select %p27, %s28, %s29
      %p33 = pneg %p27
      %p34 = scmp.eq.s32.totalorder %s18, 1
      %p35 = por %p33, %p34
      %p36 = scmp.ne.s32.totalorder %s28, %s31
      %p37 = scmp.eq.s32.totalorder %s18, 0
      %p38 = por %p36, %p37
      %p39 = scmp.ne.s32.totalorder %s28, %s31
      %p40 = scmp.eq.s32.totalorder %s23, 1
      %p41 = por %p39, %p40
      %p42 = scmp.ne.s32.totalorder %s31, %s32
      %p43 = scmp.eq.s32.totalorder %s23, 0
      %p44 = por %p42, %p43
      %p45 = scmp.ne.s32.totalorder %s31, %s32
      %p46 = scmp.eq.s32.totalorder %s24, 1
      %p47 = por %p45, %p46
      %p49 = scmp.ne.s32.totalorder %s32, %s48
      %p50 = scmp.eq.s32.totalorder %s24, 0
      %p51 = por %p49, %p50
      %s52 = ssub.s32 %s18, %s25
      %p53 = scmp.eq.s32.totalorder %s52, 0
      %s55 = sadd.s32 %s54, 1
      %s56 = scalar_select %p53, %s54, %s55
      %p59 = pneg %p53
      %p60 = scmp.eq.s32.totalorder %s18, 1
      %p61 = por %p59, %p60
      %p62 = scmp.ne.s32.totalorder %s54, %s57
      %p63 = scmp.eq.s32.totalorder %s18, 0
      %p64 = por %p62, %p63
      %p65 = scmp.ne.s32.totalorder %s54, %s57
      %p66 = scmp.eq.s32.totalorder %s23, 1
      %p67 = por %p65, %p66
      %p68 = scmp.ne.s32.totalorder %s57, %s58
      %p69 = scmp.eq.s32.totalorder %s23, 0
      %p70 = por %p68, %p69
      %p71 = scmp.ne.s32.totalorder %s57, %s58
      %p72 = scmp.eq.s32.totalorder %s24, 1
      %p73 = por %p71, %p72
      %p75 = scmp.ne.s32.totalorder %s58, %s74
      %p76 = scmp.eq.s32.totalorder %s24, 0
      %p77 = por %p75, %p76
      %s78 = ssub.s32 %s18, %s25
      %p79 = scmp.eq.s32.totalorder %s78, 0
      %s81 = sadd.s32 %s80, 1
      %s82 = scalar_select %p79, %s80, %s81
      %p85 = pneg %p79
      %p86 = scmp.eq.s32.totalorder %s18, 1
      %p87 = por %p85, %p86
      %p88 = scmp.ne.s32.totalorder %s80, %s83
      %p89 = scmp.eq.s32.totalorder %s18, 0
      %p90 = por %p88, %p89
      %p91 = scmp.ne.s32.totalorder %s80, %s83
      %p92 = scmp.eq.s32.totalorder %s23, 1
      %p93 = por %p91, %p92
      %p94 = scmp.ne.s32.totalorder %s83, %s84
      %p95 = scmp.eq.s32.totalorder %s23, 0
      %p96 = por %p94, %p95
      %p97 = scmp.ne.s32.totalorder %s83, %s84
      %p98 = scmp.eq.s32.totalorder %s24, 1
      %p99 = por %p97, %p98
      %p101 = scmp.ne.s32.totalorder %s84, %s100
      %p102 = scmp.eq.s32.totalorder %s24, 0
      %p103 = por %p101, %p102
      %s104 = ssub.s32 %s18, %s25
      %p105 = scmp.eq.s32.totalorder %s104, 0
      %s107 = sadd.s32 %s106, 1
      %s108 = scalar_select %p105, %s106, %s107
      %p111 = pneg %p105
      %p112 = scmp.eq.s32.totalorder %s18, 1
      %p113 = por %p111, %p112
      %p114 = scmp.ne.s32.totalorder %s106, %s109
      %p115 = scmp.eq.s32.totalorder %s18, 0
      %p116 = por %p114, %p115
      %p117 = scmp.ne.s32.totalorder %s106, %s109
      %p118 = scmp.eq.s32.totalorder %s23, 1
      %p119 = por %p117, %p118
      %p120 = scmp.ne.s32.totalorder %s109, %s110
      %p121 = scmp.eq.s32.totalorder %s23, 0
      %p122 = por %p120, %p121
      %p123 = scmp.ne.s32.totalorder %s109, %s110
      %p124 = scmp.eq.s32.totalorder %s24, 1
      %p125 = por %p123, %p124
      %p127 = scmp.ne.s32.totalorder %s110, %s126
      %p128 = scmp.eq.s32.totalorder %s24, 0
      %p129 = por %p127, %p128
      %p130 = scmp.le.s32.totalorder 1, %s18
      %p131 = scmp.lt.s32.totalorder %s18, 3
      %p132 = pnand %p130, %p131
      %p133 = pneg %p132
      // Predicated region
      $region9: #{tpu_custom_call.1} parent=5 // pred_check
        _
      $region10: #{tpu_custom_call.1} parent=5 // pred_check_branch
        %135 = sbr.rel (%p132) target = $region12
      $region11: #{tpu_custom_call.1} parent=5 // pred_region
        %s136 = ssub.s32 %s18, 1
      $region12: #{tpu_custom_call.1} parent=5 // pred_fallthru
        _
      %p137 = scmp.lt.s32.totalorder %s18, 2
      // Predicated region
      $region13: #{tpu_custom_call.1} parent=5 // pred_check
        %p138 = pneg %p137
      $region14: #{tpu_custom_call.1} parent=5 // pred_check_branch
        %140 = sbr.rel (%p138) target = $region16
      $region15: #{tpu_custom_call.1} parent=5 // pred_region
        // Predicated region
        $region17: #{tpu_custom_call.1} parent=15 // pred_check
          %p141 = pneg %p38
        $region18: #{tpu_custom_call.1} parent=15 // pred_check_branch
          %143 = sbr.rel (%p141) target = $region20
        $region19: #{tpu_custom_call.1} parent=15 // pred_region
          %s144 = sand.u32 %s28, 1
          %s145 = scalar_lea.sflag [#allocation3], %s144
          %s146 = sand.u32 %s28, 1
          %s147 = smul.addr %s146, 32
          %s148 = scalar_lea.vmem [#allocation2], %s147
          %s149 = smul.u32 4, %s18
          %s150 = ssub.s32 7, %s149
          %p151 = scmp.lt.s32.totalorder %s150, 4
          %s152 = scalar_select %p151, %s150, 4
          %s153 = smul.u32 64, %s152
          %s154 = smul.u32 %s153, 2
          %s156 = ssub.s32 512, %s154
          %157 = vsyncadd %s145, %s156
          %p158 = scmp.ne.s32.totalorder 0, %s154
          %s159 = smul.addr %s149, 2
          %s160 = smul.addr %s159, 64
          %s161 = scalar_lea.hbm %s0, %s160
          %s162 = smul.u32 %s152, 2
          %s163 = smul.u32 4, %s162
          %s164 = sshll.u32 %s148, 4
          %s165 = int_to_ptr.vmem [resolvable:$true] %s164
          %s166 = sshll.u32 %s163, 4
          %170 = dma.hbm_to_vmem [thread:$0]  (%p158), %s161, %s166, %s165, %s145, 64, 64, 4
        $region20: #{tpu_custom_call.1} parent=15 // pred_fallthru
          _
        // Predicated region
        $region21: #{tpu_custom_call.1} parent=15 // pred_check
          %p171 = pneg %p64
        $region22: #{tpu_custom_call.1} parent=15 // pred_check_branch
          %173 = sbr.rel (%p171) target = $region24
        $region23: #{tpu_custom_call.1} parent=15 // pred_region
          %s174 = sand.u32 %s18, 1
          %s175 = scalar_lea.sflag [#allocation6], %s174
          %s176 = sand.u32 %s54, 1
          %s177 = smul.addr %s176, 64
          %s178 = scalar_lea.vmem [#allocation5], %s177
          %s179 = smul.u32 4, %s18
          %s180 = ssub.s32 7, %s179
          %p181 = scmp.lt.s32.totalorder %s180, 4
          %s182 = scalar_select %p181, %s180, 4
          %s183 = smul.u32 64, %s182
          %s184 = smul.u32 %s183, 4
          %s186 = ssub.s32 1024, %s184
          %187 = vsyncadd %s175, %s186
          %p188 = scmp.ne.s32.totalorder 0, %s184
          %s189 = smul.addr %s179, 4
          %s190 = smul.addr %s189, 64
          %s191 = scalar_lea.hbm %s1, %s190
          %s192 = smul.u32 %s182, 4
          %s193 = smul.u32 4, %s192
          %s194 = sshll.u32 %s178, 4
          %s195 = int_to_ptr.vmem [resolvable:$true] %s194
          %s196 = sshll.u32 %s193, 4
          %200 = dma.hbm_to_vmem [thread:$0]  (%p188), %s191, %s196, %s195, %s175, 64, 64, 4
        $region24: #{tpu_custom_call.1} parent=15 // pred_fallthru
          _
        // Predicated region
        $region25: #{tpu_custom_call.1} parent=15 // pred_check
          %p201 = pneg %p90
        $region26: #{tpu_custom_call.1} parent=15 // pred_check_branch
          %203 = sbr.rel (%p201) target = $region28
        $region27: #{tpu_custom_call.1} parent=15 // pred_region
          %s204 = sand.u32 %s18, 1
          %s205 = scalar_lea.sflag [#allocation6], %s204
          %s206 = sand.u32 %s80, 1
          %s207 = smul.addr %s206, 64
          %s208 = scalar_lea.vmem [#allocation7], %s207
          %s209 = smul.u32 4, %s18
          %s210 = ssub.s32 7, %s209
          %p211 = scmp.lt.s32.totalorder %s210, 4
          %s212 = scalar_select %p211, %s210, 4
          %s213 = smul.u32 64, %s212
          %s214 = smul.u32 %s213, 4
          %s216 = ssub.s32 1024, %s214
          %217 = vsyncadd %s205, %s216
          %p218 = scmp.ne.s32.totalorder 0, %s214
          %s219 = smul.addr %s209, 4
          %s220 = smul.addr %s219, 64
          %s221 = scalar_lea.hbm %s2, %s220
          %s222 = smul.u32 %s212, 4
          %s223 = smul.u32 4, %s222
          %s224 = sshll.u32 %s208, 4
          %s225 = int_to_ptr.vmem [resolvable:$true] %s224
          %s226 = sshll.u32 %s223, 4
          %230 = dma.hbm_to_vmem [thread:$0]  (%p218), %s221, %s226, %s225, %s205, 64, 64, 4
        $region28: #{tpu_custom_call.1} parent=15 // pred_fallthru
          _
      $region16: #{tpu_custom_call.1} parent=5 // pred_fallthru
        _
      %p231 = scmp.le.s32.totalorder 1, %s18
      %p232 = scmp.lt.s32.totalorder %s18, 3
      %p233 = pnand %p231, %p232
      %p234 = pneg %p233
      // Predicated region
      $region29: #{tpu_custom_call.1} parent=5 // pred_check
        _
      $region30: #{tpu_custom_call.1} parent=5 // pred_check_branch
        %236 = sbr.rel (%p233) target = $region32
      $region31: #{tpu_custom_call.1} parent=5 // pred_region
        %s237 = ssub.s32 %s18, 1
        %s238 = sand.u32 %s31, 1
        %s239 = scalar_lea.sflag [#allocation3], %s238
        %s240 = sand.u32 %s31, 1
        %s241 = smul.addr %s240, 32
        %s242 = scalar_lea.vmem [#allocation2], %s241
        // Predicated region
        $region33: #{tpu_custom_call.1} parent=31 // pred_check
          %p243 = pneg %p44
        $region34: #{tpu_custom_call.1} parent=31 // pred_check_branch
          %245 = sbr.rel (%p243) target = $region36
        $region35: #{tpu_custom_call.1} parent=31 // pred_region
          %246 = dma.done %s239, 512
        $region36: #{tpu_custom_call.1} parent=31 // pred_fallthru
          _
        %s247 = sand.u32 %s23, 1
        %s248 = scalar_lea.sflag [#allocation6], %s247
        %s249 = sand.u32 %s57, 1
        %s250 = smul.addr %s249, 64
        %s251 = scalar_lea.vmem [#allocation5], %s250
        // Predicated region
        $region37: #{tpu_custom_call.1} parent=31 // pred_check
          %p252 = pneg %p70
        $region38: #{tpu_custom_call.1} parent=31 // pred_check_branch
          %254 = sbr.rel (%p252) target = $region40
        $region39: #{tpu_custom_call.1} parent=31 // pred_region
          %255 = dma.done %s248, 1024
        $region40: #{tpu_custom_call.1} parent=31 // pred_fallthru
          _
        %s256 = sand.u32 %s23, 1
        %s257 = scalar_lea.sflag [#allocation6], %s256
        %s258 = sand.u32 %s83, 1
        %s259 = smul.addr %s258, 64
        %s260 = scalar_lea.vmem [#allocation7], %s259
        // Predicated region
        $region41: #{tpu_custom_call.1} parent=31 // pred_check
          %p261 = pneg %p96
        $region42: #{tpu_custom_call.1} parent=31 // pred_check_branch
          %263 = sbr.rel (%p261) target = $region44
        $region43: #{tpu_custom_call.1} parent=31 // pred_region
          %264 = dma.done %s257, 1024
        $region44: #{tpu_custom_call.1} parent=31 // pred_fallthru
          _
        %s265 = sand.u32 %s31, 1
        %s266 = scalar_lea.sflag [#allocation3], %s265
        %s267 = sand.u32 %s31, 1
        %s268 = smul.addr %s267, 32
        %s269 = scalar_lea.vmem [#allocation2], %s268
        %p270 = pneg %p44
        %p271 = pneg %p41
        %s272 = sand.u32 %s23, 1
        %s273 = scalar_lea.sflag [#allocation6], %s272
        %s274 = sand.u32 %s57, 1
        %s275 = smul.addr %s274, 64
        %s276 = scalar_lea.vmem [#allocation5], %s275
        %p277 = pneg %p70
        %p278 = pneg %p67
        %s279 = sand.u32 %s23, 1
        %s280 = scalar_lea.sflag [#allocation6], %s279
        %s281 = sand.u32 %s83, 1
        %s282 = smul.addr %s281, 64
        %s283 = scalar_lea.vmem [#allocation7], %s282
        %p284 = pneg %p96
        %p285 = pneg %p93
        %p286 = pneg %p122
        %p287 = pneg %p119
        %s288 = sand.u32 %s109, 1
        %s289 = scalar_lea.sflag [#allocation4], %s288
        %s290 = sand.u32 %s109, 1
        %s291 = smul.addr %s290, 8
        %s292 = scalar_lea.vmem [#allocation8], %s291
        %s293 = smul.u32 4, %s23
        %s294 = ssub.s32 7, %s293
        %p295 = scmp.lt.s32.totalorder %s294, 4
        %s296 = scalar_select %p295, %s294, 4
        %s297 = smul.u32 64, %s296
        %s298 = smul.u32 %s297, 2
        %s299 = smul.u32 4, %s23
        %s300 = ssub.s32 7, %s299
        %p301 = scmp.lt.s32.totalorder %s300, 4
        %s302 = scalar_select %p301, %s300, 4
        %s303 = smul.u32 64, %s302
        %s304 = smul.u32 %s303, 4
        %s305 = smul.u32 4, %s23
        %s306 = ssub.s32 7, %s305
        %p307 = scmp.lt.s32.totalorder %s306, 4
        %s308 = scalar_select %p307, %s306, 4
        %s309 = smul.u32 64, %s308
        %s310 = smul.u32 %s309, 4
        %v312 = vld [vmem:[%s242] sm:$0xf]
        %v313 = vld [vmem:[%s242 + $0x4] sm:$0xf]
        %v314 = vld [vmem:[%s242 + $0x8] sm:$0xf]
        %v315 = vld [vmem:[%s242 + $0xc] sm:$0xf]
        %v316 = vld [vmem:[%s242 + $0x10] sm:$0xf]
        %v317 = vld [vmem:[%s242 + $0x14] sm:$0xf]
        %v318 = vld [vmem:[%s242 + $0x18] sm:$0xf]
        %v319 = vld [vmem:[%s242 + $0x1c] sm:$0xf]
        %v320 = vld [vmem:[%s251] sm:$0xf]
        %v321 = vld [vmem:[%s251 + $0x4] sm:$0xf]
        %v322 = vld [vmem:[%s251 + $0x8] sm:$0xf]
        %v323 = vld [vmem:[%s251 + $0xc] sm:$0xf]
        %v324 = vld [vmem:[%s251 + $0x10] sm:$0xf]
        %v325 = vld [vmem:[%s251 + $0x14] sm:$0xf]
        %v326 = vld [vmem:[%s251 + $0x18] sm:$0xf]
        %v327 = vld [vmem:[%s251 + $0x1c] sm:$0xf]
        %v328 = vld [vmem:[%s251 + $0x20] sm:$0xf]
        %v329 = vld [vmem:[%s251 + $0x24] sm:$0xf]
        %v330 = vld [vmem:[%s251 + $0x28] sm:$0xf]
        %v331 = vld [vmem:[%s251 + $0x2c] sm:$0xf]
        %v332 = vld [vmem:[%s251 + $0x30] sm:$0xf]
        %v333 = vld [vmem:[%s251 + $0x34] sm:$0xf]
        %v334 = vld [vmem:[%s251 + $0x38] sm:$0xf]
        %v335 = vld [vmem:[%s251 + $0x3c] sm:$0xf]
        %v336 = vld [vmem:[%s260] sm:$0xf]
        %v337 = vld [vmem:[%s260 + $0x4] sm:$0xf]
        %v338 = vld [vmem:[%s260 + $0x8] sm:$0xf]
        %v339 = vld [vmem:[%s260 + $0xc] sm:$0xf]
        %v340 = vld [vmem:[%s260 + $0x10] sm:$0xf]
        %v341 = vld [vmem:[%s260 + $0x14] sm:$0xf]
        %v342 = vld [vmem:[%s260 + $0x18] sm:$0xf]
        %v343 = vld [vmem:[%s260 + $0x1c] sm:$0xf]
        %v344 = vld [vmem:[%s260 + $0x20] sm:$0xf]
        %v345 = vld [vmem:[%s260 + $0x24] sm:$0xf]
        %v346 = vld [vmem:[%s260 + $0x28] sm:$0xf]
        %v347 = vld [vmem:[%s260 + $0x2c] sm:$0xf]
        %v348 = vld [vmem:[%s260 + $0x30] sm:$0xf]
        %v349 = vld [vmem:[%s260 + $0x34] sm:$0xf]
        %v350 = vld [vmem:[%s260 + $0x38] sm:$0xf]
        %v351 = vld [vmem:[%s260 + $0x3c] sm:$0xf]
        %v354 = vunpack.c.l.b16 %v312
        %v355 = vunpack.c.l.b16 %v313
        %v356 = vpack.c.b16 %v355, %v354
        %v362 = vunpack.c.l.b16 %v320
        %v363 = vunpack.c.l.b16 %v321
        %v364 = vunpack.c.l.b16 %v322
        %v365 = vunpack.c.l.b16 %v323
        %v366 = vpack.c.b16 %v363, %v362
        %v367 = vpack.c.b16 %v365, %v364
        %370 = vmatprep.subr.bf16.mxu0 0
        %371 = vmatpush1.bf16.xpose.msra.mxu0 %v366
        %372 = vmatprep.subr.bf16.mxu0 0
        %373 = vmatpush1.bf16.xpose.msra.mxu0 %v367
        %374 = vmatprep.subr.bf16.mxu0 0
        %375 = vmatpush1.bf16.xpose.msra.mxu0 0
        %376 = vmatprep.subr.bf16.mxu0 0
        %377 = vmatpush1.bf16.xpose.msra.mxu0 0
        %378 = vmatprep.subr.bf16.mxu0 0
        %379 = vmatpush1.bf16.xpose.msra.mxu0 0
        %380 = vmatprep.subr.bf16.mxu0 0
        %381 = vmatpush1.bf16.xpose.msra.mxu0 0
        %382 = vmatprep.subr.bf16.mxu0 0
        %383 = vmatpush1.bf16.xpose.msra.mxu0 0
        %384 = vmatprep.subr.bf16.mxu0 0
        %385 = vmatpush1.bf16.xpose.msra.mxu0 0
        %386 = vmatprep.subr.bf16.mxu0 0
        %387 = vmatpush1.bf16.xpose.msra.mxu0 0
        %388 = vmatprep.subr.bf16.mxu0 0
        %389 = vmatpush1.bf16.xpose.msra.mxu0 0
        %390 = vmatprep.subr.bf16.mxu0 0
        %391 = vmatpush1.bf16.xpose.msra.mxu0 0
        %392 = vmatprep.subr.bf16.mxu0 0
        %393 = vmatpush1.bf16.xpose.msra.mxu0 0
        %394 = vmatprep.subr.bf16.mxu0 0
        %395 = vmatpush1.bf16.xpose.msra.mxu0 0
        %396 = vmatprep.subr.bf16.mxu0 0
        %397 = vmatpush1.bf16.xpose.msra.mxu0 0
        %398 = vmatprep.subr.bf16.mxu0 0
        %399 = vmatpush1.bf16.xpose.msra.mxu0 0
        %400 = vmatprep.subr.bf16.mxu0 0
        %401 = vmatpush1.bf16.xpose.msra.mxu0 0
        %402 = vmatprep.mubr.bf16.mxu0 0
        %403 = vmatmul.mubr.bf16.gmra.mrb[0].mxu0 %v356
        %v404 = vpop.f32.mrb[0].mxu0
        %v405 = vadd.f32 0.0, %v404
        %v406 = vpop.f32.mrb[0].mxu0
        %v407 = vpop.f32.mrb[0].mxu0
        %v408 = vadd.f32 0.0, %v407
        %v409 = vpop.f32.mrb[0].mxu0
        %410 = vdwg.mxu0
        %v413 = vunpack.c.l.b16 %v314
        %v414 = vunpack.c.l.b16 %v315
        %v415 = vpack.c.b16 %v414, %v413
        %v421 = vunpack.c.l.b16 %v324
        %v422 = vunpack.c.l.b16 %v325
        %v423 = vunpack.c.l.b16 %v326
        %v424 = vunpack.c.l.b16 %v327
        %v425 = vpack.c.b16 %v422, %v421
        %v426 = vpack.c.b16 %v424, %v423
        %429 = vmatprep.subr.bf16.mxu0 0
        %430 = vmatpush1.bf16.xpose.msra.mxu0 %v425
        %431 = vmatprep.subr.bf16.mxu0 0
        %432 = vmatpush1.bf16.xpose.msra.mxu0 %v426
        %433 = vmatprep.subr.bf16.mxu0 0
        %434 = vmatpush1.bf16.xpose.msra.mxu0 0
        %435 = vmatprep.subr.bf16.mxu0 0
        %436 = vmatpush1.bf16.xpose.msra.mxu0 0
        %437 = vmatprep.subr.bf16.mxu0 0
        %438 = vmatpush1.bf16.xpose.msra.mxu0 0
        %439 = vmatprep.subr.bf16.mxu0 0
        %440 = vmatpush1.bf16.xpose.msra.mxu0 0
        %441 = vmatprep.subr.bf16.mxu0 0
        %442 = vmatpush1.bf16.xpose.msra.mxu0 0
        %443 = vmatprep.subr.bf16.mxu0 0
        %444 = vmatpush1.bf16.xpose.msra.mxu0 0
        %445 = vmatprep.subr.bf16.mxu0 0
        %446 = vmatpush1.bf16.xpose.msra.mxu0 0
        %447 = vmatprep.subr.bf16.mxu0 0
        %448 = vmatpush1.bf16.xpose.msra.mxu0 0
        %449 = vmatprep.subr.bf16.mxu0 0
        %450 = vmatpush1.bf16.xpose.msra.mxu0 0
        %451 = vmatprep.subr.bf16.mxu0 0
        %452 = vmatpush1.bf16.xpose.msra.mxu0 0
        %453 = vmatprep.subr.bf16.mxu0 0
        %454 = vmatpush1.bf16.xpose.msra.mxu0 0
        %455 = vmatprep.subr.bf16.mxu0 0
        %456 = vmatpush1.bf16.xpose.msra.mxu0 0
        %457 = vmatprep.subr.bf16.mxu0 0
        %458 = vmatpush1.bf16.xpose.msra.mxu0 0
        %459 = vmatprep.subr.bf16.mxu0 0
        %460 = vmatpush1.bf16.xpose.msra.mxu0 0
        %461 = vmatprep.mubr.bf16.mxu0 0
        %462 = vmatmul.mubr.bf16.gmra.mrb[0].mxu0 %v415
        %v463 = vpop.f32.mrb[0].mxu0
        %v464 = vadd.f32 0.0, %v463
        %v465 = vpop.f32.mrb[0].mxu0
        %v466 = vpop.f32.mrb[0].mxu0
        %v467 = vadd.f32 0.0, %v466
        %v468 = vpop.f32.mrb[0].mxu0
        %469 = vdwg.mxu0
        %v472 = vunpack.c.l.b16 %v316
        %v473 = vunpack.c.l.b16 %v317
        %v474 = vpack.c.b16 %v473, %v472
        %v480 = vunpack.c.l.b16 %v328
        %v481 = vunpack.c.l.b16 %v329
        %v482 = vunpack.c.l.b16 %v330
        %v483 = vunpack.c.l.b16 %v331
        %v484 = vpack.c.b16 %v481, %v480
        %v485 = vpack.c.b16 %v483, %v482
        %488 = vmatprep.subr.bf16.mxu0 0
        %489 = vmatpush1.bf16.xpose.msra.mxu0 %v484
        %490 = vmatprep.subr.bf16.mxu0 0
        %491 = vmatpush1.bf16.xpose.msra.mxu0 %v485
        %492 = vmatprep.subr.bf16.mxu0 0
        %493 = vmatpush1.bf16.xpose.msra.mxu0 0
        %494 = vmatprep.subr.bf16.mxu0 0
        %495 = vmatpush1.bf16.xpose.msra.mxu0 0
        %496 = vmatprep.subr.bf16.mxu0 0
        %497 = vmatpush1.bf16.xpose.msra.mxu0 0
        %498 = vmatprep.subr.bf16.mxu0 0
        %499 = vmatpush1.bf16.xpose.msra.mxu0 0
        %500 = vmatprep.subr.bf16.mxu0 0
        %501 = vmatpush1.bf16.xpose.msra.mxu0 0
        %502 = vmatprep.subr.bf16.mxu0 0
        %503 = vmatpush1.bf16.xpose.msra.mxu0 0
        %504 = vmatprep.subr.bf16.mxu0 0
        %505 = vmatpush1.bf16.xpose.msra.mxu0 0
        %506 = vmatprep.subr.bf16.mxu0 0
        %507 = vmatpush1.bf16.xpose.msra.mxu0 0
        %508 = vmatprep.subr.bf16.mxu0 0
        %509 = vmatpush1.bf16.xpose.msra.mxu0 0
        %510 = vmatprep.subr.bf16.mxu0 0
        %511 = vmatpush1.bf16.xpose.msra.mxu0 0
        %512 = vmatprep.subr.bf16.mxu0 0
        %513 = vmatpush1.bf16.xpose.msra.mxu0 0
        %514 = vmatprep.subr.bf16.mxu0 0
        %515 = vmatpush1.bf16.xpose.msra.mxu0 0
        %516 = vmatprep.subr.bf16.mxu0 0
        %517 = vmatpush1.bf16.xpose.msra.mxu0 0
        %518 = vmatprep.subr.bf16.mxu0 0
        %519 = vmatpush1.bf16.xpose.msra.mxu0 0
        %520 = vmatprep.mubr.bf16.mxu0 0
        %521 = vmatmul.mubr.bf16.gmra.mrb[0].mxu0 %v474
        %v522 = vpop.f32.mrb[0].mxu0
        %v523 = vadd.f32 0.0, %v522
        %v524 = vpop.f32.mrb[0].mxu0
        %v525 = vpop.f32.mrb[0].mxu0
        %v526 = vadd.f32 0.0, %v525
        %v527 = vpop.f32.mrb[0].mxu0
        %528 = vdwg.mxu0
        %v531 = vunpack.c.l.b16 %v318
        %v532 = vunpack.c.l.b16 %v319
        %v533 = vpack.c.b16 %v532, %v531
        %v539 = vunpack.c.l.b16 %v332
        %v540 = vunpack.c.l.b16 %v333
        %v541 = vunpack.c.l.b16 %v334
        %v542 = vunpack.c.l.b16 %v335
        %v543 = vpack.c.b16 %v540, %v539
        %v544 = vpack.c.b16 %v542, %v541
        %547 = vmatprep.subr.bf16.mxu0 0
        %548 = vmatpush1.bf16.xpose.msra.mxu0 %v543
        %549 = vmatprep.subr.bf16.mxu0 0
        %550 = vmatpush1.bf16.xpose.msra.mxu0 %v544
        %551 = vmatprep.subr.bf16.mxu0 0
        %552 = vmatpush1.bf16.xpose.msra.mxu0 0
        %553 = vmatprep.subr.bf16.mxu0 0
        %554 = vmatpush1.bf16.xpose.msra.mxu0 0
        %555 = vmatprep.subr.bf16.mxu0 0
        %556 = vmatpush1.bf16.xpose.msra.mxu0 0
        %557 = vmatprep.subr.bf16.mxu0 0
        %558 = vmatpush1.bf16.xpose.msra.mxu0 0
        %559 = vmatprep.subr.bf16.mxu0 0
        %560 = vmatpush1.bf16.xpose.msra.mxu0 0
        %561 = vmatprep.subr.bf16.mxu0 0
        %562 = vmatpush1.bf16.xpose.msra.mxu0 0
        %563 = vmatprep.subr.bf16.mxu0 0
        %564 = vmatpush1.bf16.xpose.msra.mxu0 0
        %565 = vmatprep.subr.bf16.mxu0 0
        %566 = vmatpush1.bf16.xpose.msra.mxu0 0
        %567 = vmatprep.subr.bf16.mxu0 0
        %568 = vmatpush1.bf16.xpose.msra.mxu0 0
        %569 = vmatprep.subr.bf16.mxu0 0
        %570 = vmatpush1.bf16.xpose.msra.mxu0 0
        %571 = vmatprep.subr.bf16.mxu0 0
        %572 = vmatpush1.bf16.xpose.msra.mxu0 0
        %573 = vmatprep.subr.bf16.mxu0 0
        %574 = vmatpush1.bf16.xpose.msra.mxu0 0
        %575 = vmatprep.subr.bf16.mxu0 0
        %576 = vmatpush1.bf16.xpose.msra.mxu0 0
        %577 = vmatprep.subr.bf16.mxu0 0
        %578 = vmatpush1.bf16.xpose.msra.mxu0 0
        %579 = vmatprep.mubr.bf16.mxu0 0
        %580 = vmatmul.mubr.bf16.gmra.mrb[0].mxu0 %v533
        %v581 = vpop.f32.mrb[0].mxu0
        %v582 = vadd.f32 0.0, %v581
        %v583 = vpop.f32.mrb[0].mxu0
        %v584 = vpop.f32.mrb[0].mxu0
        %v585 = vadd.f32 0.0, %v584
        %v586 = vpop.f32.mrb[0].mxu0
        %587 = vdwg.mxu0
        %v592 = vunpack.c.l.b16 %v336
        %v593 = vunpack.c.l.b16 %v337
        %v594 = vunpack.c.l.b16 %v338
        %v595 = vunpack.c.l.b16 %v339
        %v596 = vpack.c.b16 %v593, %v592
        %v597 = vpack.c.b16 %v595, %v594
        %600 = vmatprep.subr.bf16.mxu0 0
        %601 = vmatpush1.bf16.xpose.msra.mxu0 %v596
        %602 = vmatprep.subr.bf16.mxu0 0
        %603 = vmatpush1.bf16.xpose.msra.mxu0 %v597
        %604 = vmatprep.subr.bf16.mxu0 0
        %605 = vmatpush1.bf16.xpose.msra.mxu0 0
        %606 = vmatprep.subr.bf16.mxu0 0
        %607 = vmatpush1.bf16.xpose.msra.mxu0 0
        %608 = vmatprep.subr.bf16.mxu0 0
        %609 = vmatpush1.bf16.xpose.msra.mxu0 0
        %610 = vmatprep.subr.bf16.mxu0 0
        %611 = vmatpush1.bf16.xpose.msra.mxu0 0
        %612 = vmatprep.subr.bf16.mxu0 0
        %613 = vmatpush1.bf16.xpose.msra.mxu0 0
        %614 = vmatprep.subr.bf16.mxu0 0
        %615 = vmatpush1.bf16.xpose.msra.mxu0 0
        %616 = vmatprep.subr.bf16.mxu0 0
        %617 = vmatpush1.bf16.xpose.msra.mxu0 0
        %618 = vmatprep.subr.bf16.mxu0 0
        %619 = vmatpush1.bf16.xpose.msra.mxu0 0
        %620 = vmatprep.subr.bf16.mxu0 0
        %621 = vmatpush1.bf16.xpose.msra.mxu0 0
        %622 = vmatprep.subr.bf16.mxu0 0
        %623 = vmatpush1.bf16.xpose.msra.mxu0 0
        %624 = vmatprep.subr.bf16.mxu0 0
        %625 = vmatpush1.bf16.xpose.msra.mxu0 0
        %626 = vmatprep.subr.bf16.mxu0 0
        %627 = vmatpush1.bf16.xpose.msra.mxu0 0
        %628 = vmatprep.subr.bf16.mxu0 0
        %629 = vmatpush1.bf16.xpose.msra.mxu0 0
        %630 = vmatprep.subr.bf16.mxu0 0
        %631 = vmatpush1.bf16.xpose.msra.mxu0 0
        %632 = vmatprep.mubr.bf16.mxu0 0
        %633 = vmatmul.mubr.bf16.gmra.mrb[0].mxu0 %v356
        %v634 = vpop.f32.mrb[0].mxu0
        %v635 = vadd.f32 0.0, %v634
        %v636 = vpop.f32.mrb[0].mxu0
        %v637 = vpop.f32.mrb[0].mxu0
        %v638 = vadd.f32 0.0, %v637
        %v639 = vpop.f32.mrb[0].mxu0
        %640 = vdwg.mxu0
        %v645 = vunpack.c.l.b16 %v340
        %v646 = vunpack.c.l.b16 %v341
        %v647 = vunpack.c.l.b16 %v342
        %v648 = vunpack.c.l.b16 %v343
        %v649 = vpack.c.b16 %v646, %v645
        %v650 = vpack.c.b16 %v648, %v647
        %653 = vmatprep.subr.bf16.mxu0 0
        %654 = vmatpush1.bf16.xpose.msra.mxu0 %v649
        %655 = vmatprep.subr.bf16.mxu0 0
        %656 = vmatpush1.bf16.xpose.msra.mxu0 %v650
        %657 = vmatprep.subr.bf16.mxu0 0
        %658 = vmatpush1.bf16.xpose.msra.mxu0 0
        %659 = vmatprep.subr.bf16.mxu0 0
        %660 = vmatpush1.bf16.xpose.msra.mxu0 0
        %661 = vmatprep.subr.bf16.mxu0 0
        %662 = vmatpush1.bf16.xpose.msra.mxu0 0
        %663 = vmatprep.subr.bf16.mxu0 0
        %664 = vmatpush1.bf16.xpose.msra.mxu0 0
        %665 = vmatprep.subr.bf16.mxu0 0
        %666 = vmatpush1.bf16.xpose.msra.mxu0 0
        %667 = vmatprep.subr.bf16.mxu0 0
        %668 = vmatpush1.bf16.xpose.msra.mxu0 0
        %669 = vmatprep.subr.bf16.mxu0 0
        %670 = vmatpush1.bf16.xpose.msra.mxu0 0
        %671 = vmatprep.subr.bf16.mxu0 0
        %672 = vmatpush1.bf16.xpose.msra.mxu0 0
        %673 = vmatprep.subr.bf16.mxu0 0
        %674 = vmatpush1.bf16.xpose.msra.mxu0 0
        %675 = vmatprep.subr.bf16.mxu0 0
        %676 = vmatpush1.bf16.xpose.msra.mxu0 0
        %677 = vmatprep.subr.bf16.mxu0 0
        %678 = vmatpush1.bf16.xpose.msra.mxu0 0
        %679 = vmatprep.subr.bf16.mxu0 0
        %680 = vmatpush1.bf16.xpose.msra.mxu0 0
        %681 = vmatprep.subr.bf16.mxu0 0
        %682 = vmatpush1.bf16.xpose.msra.mxu0 0
        %683 = vmatprep.subr.bf16.mxu0 0
        %684 = vmatpush1.bf16.xpose.msra.mxu0 0
        %685 = vmatprep.mubr.bf16.mxu0 0
        %686 = vmatmul.mubr.bf16.gmra.mrb[0].mxu0 %v415
        %v687 = vpop.f32.mrb[0].mxu0
        %v688 = vadd.f32 0.0, %v687
        %v689 = vpop.f32.mrb[0].mxu0
        %v690 = vpop.f32.mrb[0].mxu0
        %v691 = vadd.f32 0.0, %v690
        %v692 = vpop.f32.mrb[0].mxu0
        %693 = vdwg.mxu0
        %v698 = vunpack.c.l.b16 %v344
        %v699 = vunpack.c.l.b16 %v345
        %v700 = vunpack.c.l.b16 %v346
        %v701 = vunpack.c.l.b16 %v347
        %v702 = vpack.c.b16 %v699, %v698
        %v703 = vpack.c.b16 %v701, %v700
        %706 = vmatprep.subr.bf16.mxu0 0
        %707 = vmatpush1.bf16.xpose.msra.mxu0 %v702
        %708 = vmatprep.subr.bf16.mxu0 0
        %709 = vmatpush1.bf16.xpose.msra.mxu0 %v703
        %710 = vmatprep.subr.bf16.mxu0 0
        %711 = vmatpush1.bf16.xpose.msra.mxu0 0
        %712 = vmatprep.subr.bf16.mxu0 0
        %713 = vmatpush1.bf16.xpose.msra.mxu0 0
        %714 = vmatprep.subr.bf16.mxu0 0
        %715 = vmatpush1.bf16.xpose.msra.mxu0 0
        %716 = vmatprep.subr.bf16.mxu0 0
        %717 = vmatpush1.bf16.xpose.msra.mxu0 0
        %718 = vmatprep.subr.bf16.mxu0 0
        %719 = vmatpush1.bf16.xpose.msra.mxu0 0
        %720 = vmatprep.subr.bf16.mxu0 0
        %721 = vmatpush1.bf16.xpose.msra.mxu0 0
        %722 = vmatprep.subr.bf16.mxu0 0
        %723 = vmatpush1.bf16.xpose.msra.mxu0 0
        %724 = vmatprep.subr.bf16.mxu0 0
        %725 = vmatpush1.bf16.xpose.msra.mxu0 0
        %726 = vmatprep.subr.bf16.mxu0 0
        %727 = vmatpush1.bf16.xpose.msra.mxu0 0
        %728 = vmatprep.subr.bf16.mxu0 0
        %729 = vmatpush1.bf16.xpose.msra.mxu0 0
        %730 = vmatprep.subr.bf16.mxu0 0
        %731 = vmatpush1.bf16.xpose.msra.mxu0 0
        %732 = vmatprep.subr.bf16.mxu0 0
        %733 = vmatpush1.bf16.xpose.msra.mxu0 0
        %734 = vmatprep.subr.bf16.mxu0 0
        %735 = vmatpush1.bf16.xpose.msra.mxu0 0
        %736 = vmatprep.subr.bf16.mxu0 0
        %737 = vmatpush1.bf16.xpose.msra.mxu0 0
        %738 = vmatprep.mubr.bf16.mxu0 0
        %739 = vmatmul.mubr.bf16.gmra.mrb[0].mxu0 %v474
        %v740 = vpop.f32.mrb[0].mxu0
        %v741 = vadd.f32 0.0, %v740
        %v742 = vpop.f32.mrb[0].mxu0
        %v743 = vpop.f32.mrb[0].mxu0
        %v744 = vadd.f32 0.0, %v743
        %v745 = vpop.f32.mrb[0].mxu0
        %746 = vdwg.mxu0
        %v751 = vunpack.c.l.b16 %v348
        %v752 = vunpack.c.l.b16 %v349
        %v753 = vunpack.c.l.b16 %v350
        %v754 = vunpack.c.l.b16 %v351
        %v755 = vpack.c.b16 %v752, %v751
        %v756 = vpack.c.b16 %v754, %v753
        %759 = vmatprep.subr.bf16.mxu0 0
        %760 = vmatpush1.bf16.xpose.msra.mxu0 %v755
        %761 = vmatprep.subr.bf16.mxu0 0
        %762 = vmatpush1.bf16.xpose.msra.mxu0 %v756
        %763 = vmatprep.subr.bf16.mxu0 0
        %764 = vmatpush1.bf16.xpose.msra.mxu0 0
        %765 = vmatprep.subr.bf16.mxu0 0
        %766 = vmatpush1.bf16.xpose.msra.mxu0 0
        %767 = vmatprep.subr.bf16.mxu0 0
        %768 = vmatpush1.bf16.xpose.msra.mxu0 0
        %769 = vmatprep.subr.bf16.mxu0 0
        %770 = vmatpush1.bf16.xpose.msra.mxu0 0
        %771 = vmatprep.subr.bf16.mxu0 0
        %772 = vmatpush1.bf16.xpose.msra.mxu0 0
        %773 = vmatprep.subr.bf16.mxu0 0
        %774 = vmatpush1.bf16.xpose.msra.mxu0 0
        %775 = vmatprep.subr.bf16.mxu0 0
        %776 = vmatpush1.bf16.xpose.msra.mxu0 0
        %777 = vmatprep.subr.bf16.mxu0 0
        %778 = vmatpush1.bf16.xpose.msra.mxu0 0
        %779 = vmatprep.subr.bf16.mxu0 0
        %780 = vmatpush1.bf16.xpose.msra.mxu0 0
        %781 = vmatprep.subr.bf16.mxu0 0
        %782 = vmatpush1.bf16.xpose.msra.mxu0 0
        %783 = vmatprep.subr.bf16.mxu0 0
        %784 = vmatpush1.bf16.xpose.msra.mxu0 0
        %785 = vmatprep.subr.bf16.mxu0 0
        %786 = vmatpush1.bf16.xpose.msra.mxu0 0
        %787 = vmatprep.subr.bf16.mxu0 0
        %788 = vmatpush1.bf16.xpose.msra.mxu0 0
        %789 = vmatprep.subr.bf16.mxu0 0
        %790 = vmatpush1.bf16.xpose.msra.mxu0 0
        %791 = vmatprep.mubr.bf16.mxu0 0
        %792 = vmatmul.mubr.bf16.gmra.mrb[0].mxu0 %v533
        %v793 = vpop.f32.mrb[0].mxu0
        %v794 = vadd.f32 0.0, %v793
        %v795 = vpop.f32.mrb[0].mxu0
        %v796 = vpop.f32.mrb[0].mxu0
        %v797 = vadd.f32 0.0, %v796
        %v798 = vpop.f32.mrb[0].mxu0
        %799 = vdwg.mxu0
        %vm800 = vcmask 261120
        %v801 = vsel %vm800, %v405, -inf
        %802 = vmax.xlane.f32.xlu0 %v801
        %v803 = vpop.xlane.xlu0 %802
        %v804 = vsel %vm800, %v408, -inf
        %805 = vmax.xlane.f32.xlu0 %v804
        %v806 = vpop.xlane.xlu0 %805
        %v807 = vsel %vm800, %v464, -inf
        %808 = vmax.xlane.f32.xlu0 %v807
        %v809 = vpop.xlane.xlu0 %808
        %v810 = vsel %vm800, %v467, -inf
        %811 = vmax.xlane.f32.xlu0 %v810
        %v812 = vpop.xlane.xlu0 %811
        %v813 = vsel %vm800, %v523, -inf
        %814 = vmax.xlane.f32.xlu0 %v813
        %v815 = vpop.xlane.xlu0 %814
        %v816 = vsel %vm800, %v526, -inf
        %817 = vmax.xlane.f32.xlu0 %v816
        %v818 = vpop.xlane.xlu0 %817
        %v819 = vsel %vm800, %v582, -inf
        %820 = vmax.xlane.f32.xlu0 %v819
        %v821 = vpop.xlane.xlu0 %820
        %v822 = vsel %vm800, %v585, -inf
        %823 = vmax.xlane.f32.xlu0 %v822
        %v824 = vpop.xlane.xlu0 %823
        %v825 = vsel %vm800, %v635, -inf
        %826 = vmax.xlane.f32.xlu0 %v825
        %v827 = vpop.xlane.xlu0 %826
        %v828 = vsel %vm800, %v638, -inf
        %829 = vmax.xlane.f32.xlu0 %v828
        %v830 = vpop.xlane.xlu0 %829
        %v831 = vsel %vm800, %v688, -inf
        %832 = vmax.xlane.f32.xlu0 %v831
        %v833 = vpop.xlane.xlu0 %832
        %v834 = vsel %vm800, %v691, -inf
        %835 = vmax.xlane.f32.xlu0 %v834
        %v836 = vpop.xlane.xlu0 %835
        %v837 = vsel %vm800, %v741, -inf
        %838 = vmax.xlane.f32.xlu0 %v837
        %v839 = vpop.xlane.xlu0 %838
        %v840 = vsel %vm800, %v744, -inf
        %841 = vmax.xlane.f32.xlu0 %v840
        %v842 = vpop.xlane.xlu0 %841
        %v843 = vsel %vm800, %v794, -inf
        %844 = vmax.xlane.f32.xlu0 %v843
        %v845 = vpop.xlane.xlu0 %844
        %v846 = vsel %vm800, %v797, -inf
        %847 = vmax.xlane.f32.xlu0 %v846
        %v848 = vpop.xlane.xlu0 %847
        %v849 = vsub.f32 %v827, %v803
        %v850 = vsub.f32 %v830, %v806
        %v851 = vsub.f32 %v833, %v809
        %v852 = vsub.f32 %v836, %v812
        %v853 = vsub.f32 %v839, %v815
        %v854 = vsub.f32 %v842, %v818
        %v855 = vsub.f32 %v845, %v821
        %v856 = vsub.f32 %v848, %v824
        %v865 = vlaneseq
        %v866 = vand.u32 %v865, 127
        %v867 = vlaneseq
        %v868 = vshrl.u32 %v867, 7
        %v869 = vsub.s32 %v866, %v868
        %v870 = vrot.slane %v849, %v869
        %v871 = vadd.s32 %v866, 4294967288
        %v872 = vlaneseq
        %v873 = vshrl.u32 %v872, 7
        %v874 = vsub.s32 %v871, %v873
        %v875 = vrot.slane %v850, %v874
        %vm876 = vcmask 130112
        %v877 = vsel %vm876, %v875, %v870
        %v878 = vlaneseq
        %v879 = vshrl.u32 %v878, 7
        %v880 = vsub.s32 %v866, %v879
        %v881 = vrot.slane %v851, %v880
        %v882 = vlaneseq
        %v883 = vshrl.u32 %v882, 7
        %v884 = vsub.s32 %v871, %v883
        %v885 = vrot.slane %v852, %v884
        %v886 = vsel %vm876, %v885, %v881
        %v887 = vlaneseq
        %v888 = vshrl.u32 %v887, 7
        %v889 = vsub.s32 %v866, %v888
        %v890 = vrot.slane %v853, %v889
        %v891 = vlaneseq
        %v892 = vshrl.u32 %v891, 7
        %v893 = vsub.s32 %v871, %v892
        %v894 = vrot.slane %v854, %v893
        %v895 = vsel %vm876, %v894, %v890
        %v896 = vlaneseq
        %v897 = vshrl.u32 %v896, 7
        %v898 = vsub.s32 %v866, %v897
        %v899 = vrot.slane %v855, %v898
        %v900 = vlaneseq
        %v901 = vshrl.u32 %v900, 7
        %v902 = vsub.s32 %v871, %v901
        %v903 = vrot.slane %v856, %v902
        %v904 = vsel %vm876, %v903, %v899
        %vm905 = vcmask 1041409
        %v906 = vsel %vm905, %v886, %v877
        %vm907 = vcmask 1042434
        %v908 = vsel %vm907, %v895, %v906
        %vm909 = vcmask 1043459
        %v910 = vsel %vm909, %v904, %v908
        %vm912 = vcmask 125952
        %v913 = vsel %vm912, %v910, 0.0
        %914 = vadd.xlane.f32.xlu0 %v913
        %v915 = vpop.xlane.xlu0 %914
        %v916 = vadd.f32 %v915, 1.0
        %v917 = vmax.f32 %v916, 0.0
        %v918 = vlaneseq
        %v919 = vshrl.u32 %v918, 7
        %s920 = smul.u32 %s23, 4
        %v921 = vstv %s920
        %v922 = vadd.s32 %v921, %v919
        %vm923 = vcmp.lt.s32.totalorder %v922, 7
        %v924 = vsel %vm923, %v917, 0.0
        %vm925 = vcmask 3072
        %v926 = vsel %vm925, %v924, 0.0
        %927 = vadd.xlane.f32.xlu0 %v926
        %v928 = vpop.xlane.xlu0 %927
        %v929 = vrot.slane %v928, 4
        %v930 = vadd.f32 %v928, %v929
        %v931 = vrot.slane %v930, 2
        %v932 = vadd.f32 %v930, %v931
        %v933 = vrot.slane %v932, 1
        %v934 = vadd.f32 %v932, %v933
        %s935 = vtos %v934
        %v936 = vstv %s935
        %937 = vst [vmem:[%s292] sm:$0xff] %v936
        %s938 = sand.u32 %s109, 1
        %s939 = scalar_lea.sflag [#allocation4], %s938
        %s940 = sand.u32 %s109, 1
        %s941 = smul.addr %s940, 8
        %s942 = scalar_lea.vmem [#allocation8], %s941
        // Predicated region
        $region45: #{tpu_custom_call.1} parent=31 // pred_check
          %p943 = pneg %p119
        $region46: #{tpu_custom_call.1} parent=31 // pred_check_branch
          %945 = sbr.rel (%p943) target = $region48
        $region47: #{tpu_custom_call.1} parent=31 // pred_region
          %s947 = ssub.s32 128, 128
          %948 = vsyncadd %s939, %s947
          %s949 = smul.addr %s23, 128
          %s950 = scalar_lea.hbm %s3, %s949
          %s952 = sshll.u32 %s942, 4
          %s953 = int_to_ptr.vmem [resolvable:$true] %s952
          %955 = dma.vmem_to_hbm [thread:$0]  %s953, 128, %s950, %s939
        $region48: #{tpu_custom_call.1} parent=31 // pred_fallthru
          _
      $region32: #{tpu_custom_call.1} parent=5 // pred_fallthru
        _
      %p956 = scmp.le.s32.totalorder 2, %s18
      // Predicated region
      $region49: #{tpu_custom_call.1} parent=5 // pred_check
        %p957 = pneg %p956
      $region50: #{tpu_custom_call.1} parent=5 // pred_check_branch
        %959 = sbr.rel (%p957) target = $region52
      $region51: #{tpu_custom_call.1} parent=5 // pred_region
        %s960 = ssub.s32 %s18, 2
        // Predicated region
        $region53: #{tpu_custom_call.1} parent=51 // pred_check
          %p961 = pneg %p125
        $region54: #{tpu_custom_call.1} parent=51 // pred_check_branch
          %963 = sbr.rel (%p961) target = $region56
        $region55: #{tpu_custom_call.1} parent=51 // pred_region
          %s964 = sand.u32 %s110, 1
          %s965 = scalar_lea.sflag [#allocation4], %s964
          %s966 = sand.u32 %s110, 1
          %s967 = smul.addr %s966, 8
          %s968 = scalar_lea.vmem [#allocation8], %s967
          %969 = dma.done %s965, 128
        $region56: #{tpu_custom_call.1} parent=51 // pred_fallthru
          _
      $region52: #{tpu_custom_call.1} parent=5 // pred_fallthru
        _
    $region6: #{tpu_custom_call.1} parent=1 // loop_footer
      %s22 = sadd.s32 1, %s18
    $region7: #{tpu_custom_call.1} parent=1 // loop_footer_branch
      %17 = sbr.rel target = $region3
    $region8: #{tpu_custom_call.1} parent=1 // loop_exit
      _
    %970 = vsyncpa [#allocation3], 1
    %s971 = scalar_lea.sflag [#allocation3], 1
    %972 = vsyncpa %s971, 1
    %973 = vsyncpa [#allocation6], 1
    %s974 = scalar_lea.sflag [#allocation6], 1
    %975 = vsyncpa %s974, 1
    %976 = vsyncpa [#allocation4], 1
    %s977 = scalar_lea.sflag [#allocation4], 1
    %978 = vsyncpa %s977, 1

</llo_original>
